<compile_context>
chip_gen: v6e
topology: v6e:2x2x1
jax: 0.10.0
libtpu: 0.0.40
codegen_flags: <defaults>
</compile_context>

<pallas_src>
import jax
import jax.numpy as jnp
from jax.experimental import pallas as pl
from jax.experimental.pallas import tpu as pltpu

LANE = 128
SUBLANE = 8
# Double-buffered working-set budget; fits v5e's 16 MiB default scoped VMEM with headroom.
VMEM_BUDGET_BYTES = 12 * 1024 * 1024


def _round_up(x, m):
    return (x + m - 1) // m * m


def linear_kernel(x_ref, w_ref, b_ref, o_ref):
    # x_ref: (tb, K); w_ref: (K, N_pad) in compute dtype; b_ref: (1, N_pad) f32
    x = x_ref[...]
    if x.dtype != w_ref.dtype:          # trace-time check: no cast when x is already bf16/f32
        x = x.astype(w_ref.dtype)
    acc = jnp.dot(x, w_ref[...], preferred_element_type=jnp.float32)
    o_ref[...] = (acc + b_ref[...]).astype(o_ref.dtype)


def prepare_params(weight, bias, compute_dtype=jnp.float32):
    """One-time prep (outside hot path): PyTorch (N, K) weight -> lane-dense (K, N_pad)
    transposed + zero-padded weight in the compute dtype, and (1, N_pad) f32 bias."""
    num_units, num_inp = weight.shape
    n_pad = _round_up(num_units, LANE)
    w_t = jnp.zeros((num_inp, n_pad), compute_dtype)
    w_t = w_t.at[:, :num_units].set(weight.T.astype(compute_dtype))
    b = jnp.zeros((1, n_pad), jnp.float32)
    b = b.at[:, :num_units].set(bias.astype(jnp.float32))
    return w_t, b


def my_module_forward(x, w_prepped, b_prepped, num_units, block_b=1024,
                      out_dtype=None, return_padded=False):
    """x: (B, num_inp); w_prepped: (num_inp, N_pad); b_prepped: (1, N_pad)."""
    B, K = x.shape
    n_pad = w_prepped.shape[1]
    if out_dtype is None:
        out_dtype = x.dtype

    x_item = jnp.dtype(x.dtype).itemsize
    w_item = jnp.dtype(w_prepped.dtype).itemsize
    o_item = jnp.dtype(out_dtype).itemsize

    # --- batch-tile selection ---
    # (1) target >= 2 grid steps whenever B allows (v7x megacore + DMA/compute overlap)
    tb = _round_up(pl.cdiv(B, 2), SUBLANE)
    # (2) cap by requested block size
    tb = min(tb, block_b)
    # (3) cap by VMEM budget (double-buffered x tile, out tile, W; bias is noise)
    per_row = 2 * (K * x_item + n_pad * o_item)
    fixed = 2 * (K * n_pad * w_item + n_pad * 4)
    tb_budget = max((VMEM_BUDGET_BYTES - fixed) // per_row, SUBLANE)
    tb = min(tb, tb_budget)
    tb = max((tb // SUBLANE) * SUBLANE, SUBLANE)

    grid = (pl.cdiv(B, tb),)

    cost = pl.CostEstimate(
        flops=2 * B * K * n_pad,
        transcendentals=0,
        bytes_accessed=B * K * x_item + K * n_pad * w_item
                       + B * n_pad * o_item + n_pad * 4,
    )

    out = pl.pallas_call(
        linear_kernel,
        out_shape=jax.ShapeDtypeStruct((B, n_pad), out_dtype),
        grid_spec=pltpu.PrefetchScalarGridSpec(
            num_scalar_prefetch=0,
            grid=grid,
            in_specs=[
                pl.BlockSpec((tb, K), lambda i: (i, 0)),      # x tile, pipelined over B
                pl.BlockSpec((K, n_pad), lambda i: (0, 0)),   # W resident
                pl.BlockSpec((1, n_pad), lambda i: (0, 0)),   # bias resident
            ],
            out_specs=pl.BlockSpec((tb, n_pad), lambda i: (i, 0)),
        ),
        compiler_params=pltpu.CompilerParams(
            dimension_semantics=("parallel",)),               # shard batch tiles on v7x
        cost_estimate=cost,
    )(x, w_prepped, b_prepped)

    if return_padded:
        return out                      # (B, 128) slab for consumers that can take it
    return out[:, :num_units]           # lane slice; fuses with the consumer under jit


if __name__ == "__main__":
    num_inp, num_units = 768, 18

    key = jax.random.PRNGKey(0)
    kx, kxs, kw, kb = jax.random.split(key, 4)

    # Deterministic init mimicking PyTorch nn.Linear default (uniform +/- 1/sqrt(fan_in))
    bound = 1.0 / jnp.sqrt(jnp.float32(num_inp))
    weight = jax.random.uniform(kw, (num_units, num_inp), jnp.float32, -bound, bound)
    bias = jax.random.uniform(kb, (num_units,), jnp.float32, -bound, bound)

    fwd = jax.jit(my_module_forward,
                  static_argnames=("num_units", "block_b", "out_dtype", "return_padded"))

    # ---- f32 path: B=64 -> tb=32, grid=(2,) (exercises multi-tile / megacore path) ----
    B = 64
    x = jax.random.normal(kx, (B, num_inp), jnp.float32)
    w_t_f32, b_prep = prepare_params(weight, bias, jnp.float32)
    out = jax.block_until_ready(fwd(x, w_t_f32, b_prep, num_units=num_units))
    ref = x @ weight.T + bias
    assert out.shape == (B, num_units)
    assert jnp.allclose(out, ref, atol=1e-4, rtol=1e-4)

    # ---- ragged batch (B=37): partial last block, no jnp.pad, OOB rows dropped ----
    x_small = jax.random.normal(kxs, (37, num_inp), jnp.float32)
    out_small = jax.block_until_ready(fwd(x_small, w_t_f32, b_prep, num_units=num_units))
    ref_small = x_small @ weight.T + bias
    assert out_small.shape == (37, num_units)
    assert jnp.allclose(out_small, ref_small, atol=1e-4, rtol=1e-4)

    # ---- bf16 activations + bf16 weights (v6e/v7x): X read halved, no in-kernel cast,
    #      f32 accumulate + bias add, bf16 store (out_dtype defaults to x.dtype) ----
    w_t_bf16, b_prep_bf = prepare_params(weight, bias, jnp.bfloat16)
    x_bf16 = x.astype(jnp.bfloat16)     # in a real pipeline this cast is fused upstream
    out_bf = jax.block_until_ready(fwd(x_bf16, w_t_bf16, b_prep_bf, num_units=num_units))
    assert out_bf.dtype == jnp.bfloat16
    assert jnp.allclose(out_bf.astype(jnp.float32), ref, atol=5e-2, rtol=5e-2)

    print("KERNEL_OK")
</pallas_src>

<mosaic_0001>
module attributes {stable_mosaic.version = 11 : i64} {
  func.func @linear_kernel(%arg0: i32, %arg1: memref<32x768xf32, #tpu.memory_space<vmem>>, %arg2: memref<768x128xf32, #tpu.memory_space<vmem>>, %arg3: memref<1x128xf32, #tpu.memory_space<vmem>>, %arg4: memref<32x128xf32, #tpu.memory_space<vmem>>) attributes {dimension_semantics = [#tpu.dimension_semantics<parallel>], iteration_bounds = array<i64: 2>, scalar_prefetch = 0 : i64, scratch_operands = 0 : i64, tpu.core_type = #tpu.core_type<tc>, window_params = [{transform_indices = @transform_0, window_bounds = array<i64: 32, 768>}, {pipeline_mode = #tpu.pipeline_mode<synchronous>, transform_indices = @transform_1, window_bounds = array<i64: 768, 128>}, {pipeline_mode = #tpu.pipeline_mode<synchronous>, transform_indices = @transform_2, window_bounds = array<i64: 1, 128>}, {transform_indices = @transform_3, window_bounds = array<i64: 32, 128>}]} {
    %c0 = arith.constant 0 : index
    %c0_0 = arith.constant 0 : index
    %0 = vector.load %arg1[%c0, %c0_0] : memref<32x768xf32, #tpu.memory_space<vmem>>, vector<32x768xf32>
    %c0_1 = arith.constant 0 : index
    %c0_2 = arith.constant 0 : index
    %1 = vector.load %arg2[%c0_1, %c0_2] : memref<768x128xf32, #tpu.memory_space<vmem>>, vector<768x128xf32>
    %cst = arith.constant dense<0.000000e+00> : vector<32x128xf32>
    %2 = tpu.matmul %0, %1, %cst {dimension_numbers = #tpu.dot_dimension_numbers<[1], [0], [0], [1], [0, 0, 1, 1], [], []>} : vector<32x768xf32>, vector<768x128xf32>, vector<32x128xf32> -> vector<32x128xf32>
    %c0_3 = arith.constant 0 : index
    %c0_4 = arith.constant 0 : index
    %3 = vector.load %arg3[%c0_3, %c0_4] : memref<1x128xf32, #tpu.memory_space<vmem>>, vector<1x128xf32>
    %4 = vector.broadcast %3 : vector<1x128xf32> to vector<32x128xf32>
    %5 = arith.addf %2, %4 : vector<32x128xf32>
    %c0_5 = arith.constant 0 : index
    %c0_6 = arith.constant 0 : index
    %6 = vector.load %arg4[%c0_5, %c0_6] : memref<32x128xf32, #tpu.memory_space<vmem>>, vector<32x128xf32>
    tpu.vector_store %arg4[%c0_5, %c0_6], %5 {strides = array<i32>} : memref<32x128xf32, #tpu.memory_space<vmem>>, vector<32x128xf32>,
    return
  }
  func.func @transform_0(%arg0: i32) -> (i32, i32) {
    %c0_i32 = arith.constant 0 : i32
    %c0_i32_0 = arith.constant 0 : i32
    return %arg0, %c0_i32 : i32, i32
  }
  func.func @transform_1(%arg0: i32) -> (i32, i32) {
    %c0_i32 = arith.constant 0 : i32
    %c0_i32_0 = arith.constant 0 : i32
    %c0_i32_1 = arith.constant 0 : i32
    return %c0_i32, %c0_i32_0 : i32, i32
  }
  func.func @transform_2(%arg0: i32) -> (i32, i32) {
    %c0_i32 = arith.constant 0 : i32
    %c0_i32_0 = arith.constant 0 : i32
    %c0_i32_1 = arith.constant 0 : i32
    return %c0_i32, %c0_i32_0 : i32, i32
  }
  func.func @transform_3(%arg0: i32) -> (i32, i32) {
    %c0_i32 = arith.constant 0 : i32
    %c0_i32_0 = arith.constant 0 : i32
    return %arg0, %c0_i32 : i32, i32
  }
}

</mosaic_0001>

<llo_original>
// kernel: my_module_forward.1
$region0: #{my_module_forward.1}
  #allocation0 [shape = 'u32[]', space=smem, size = 0x4, offset = 0x4, fixed_abs, tag = 'smem constant byte address 0x4 - core index']
  #allocation1 [shape = 'u32[144,128]{1,0:T(1,128)}', space=vmem, size = 0x12000, scoped, tag = 'internal scratch']
  %s0 = inlined_call_operand.hbm [shape: f32[64,768], index: 0, kind: input, shape index: {}]
  %s1 = inlined_call_operand.hbm [shape: f32[768,128], index: 1, kind: input, shape index: {}]
  %s2 = inlined_call_operand.vmem [shape: f32[1,128], index: 2, kind: input, shape index: {}]
  %s3 = inlined_call_operand.vmem [shape: f32[64,128], index: 3, kind: output, shape index: {}]
  %s4 = sld [smem:[#allocation0]]
  $region53: #{my_module_forward.1} parent=0
    _
  %s6 = ssub.s32 1, %s4
  %s7 = scalar_select 0, %s6, %s4
  $region1: #{my_module_forward.1} parent=0
    #allocation2 [shape = 'u8[196608]{0}', space=vmem, size = 0x30000, scoped, tag = 'input window, operand 0']
    #allocation3 [shape = 's32[2]{0}', space=sflag, size = 0x8, scoped, tag = 'scoped memory for my_module_forward.1']
    #allocation4 [shape = 'u8[393216]{0}', space=vmem, size = 0x60000, scoped, tag = 'input window, operand 1, single buffered']
    #allocation5 [shape = 's32[1]{0}', space=sflag, size = 0x4, scoped, tag = 'scoped memory for my_module_forward.1']
    %8 = vsyncpa [#allocation3], 0
    %s9 = scalar_lea.sflag [#allocation3], 1
    %10 = vsyncpa %s9, 0
    %11 = vsyncpa [#allocation5], 0
    loop: start=0, step=1, limit=4
    $region2: #{my_module_forward.1} parent=1 // loop_pre_header
      _
    $region3: #{my_module_forward.1} parent=1 // loop_header
      %s13 = sphi 0, %s17
      %p14 = scmp.ge.s32.totalorder %s13, 4
      %s23 = sphi 0, %s25
      %s26 = sphi 0, %s23
      %s27 = sphi 0, %s26
      %s43 = sphi 0, %s27
      %s47 = sphi 0, %s47
      %s49 = sphi 0, %s47
      %s50 = sphi 0, %s49
      %s64 = sphi 0, %s50
      %s68 = sphi 0, %s68
      %s70 = sphi 0, %s68
      %s71 = sphi 0, %s70
      %s85 = sphi 0, %s71
      %s91 = sphi 0, %s93
      %s94 = sphi 0, %s91
      %s95 = sphi 0, %s94
      %s111 = sphi 0, %s95
    $region4: #{my_module_forward.1} parent=1 // loop_header_branch
      %16 = sbr.rel (%p14) target = $region8
    $region5: #{my_module_forward.1} parent=1 // loop_body
      %s18 = ssub.s32 %s13, 1
      %s19 = ssub.s32 %s13, 2
      %s20 = sadd.s32 %s13, 1
      %s21 = ssub.s32 %s13, %s20
      %p22 = scmp.eq.s32.totalorder %s21, 0
      %s24 = sadd.s32 %s23, 1
      %s25 = scalar_select %p22, %s23, %s24
      %p28 = pneg %p22
      %p29 = scmp.eq.s32.totalorder %s13, 1
      %p30 = por %p28, %p29
      %p31 = scmp.ne.s32.totalorder %s23, %s26
      %p32 = scmp.eq.s32.totalorder %s13, 0
      %p33 = por %p31, %p32
      %p34 = scmp.ne.s32.totalorder %s23, %s26
      %p35 = scmp.eq.s32.totalorder %s18, 1
      %p36 = por %p34, %p35
      %p37 = scmp.ne.s32.totalorder %s26, %s27
      %p38 = scmp.eq.s32.totalorder %s18, 0
      %p39 = por %p37, %p38
      %p40 = scmp.ne.s32.totalorder %s26, %s27
      %p41 = scmp.eq.s32.totalorder %s19, 1
      %p42 = por %p40, %p41
      %p44 = scmp.ne.s32.totalorder %s27, %s43
      %p45 = scmp.eq.s32.totalorder %s19, 0
      %p46 = por %p44, %p45
      %s48 = sadd.s32 %s47, 1
      %p51 = scmp.eq.s32.totalorder %s13, 1
      %p52 = scmp.ne.s32.totalorder %s47, %s49
      %p53 = scmp.eq.s32.totalorder %s13, 0
      %p54 = por %p52, %p53
      %p55 = scmp.ne.s32.totalorder %s47, %s49
      %p56 = scmp.eq.s32.totalorder %s18, 1
      %p57 = por %p55, %p56
      %p58 = scmp.ne.s32.totalorder %s49, %s50
      %p59 = scmp.eq.s32.totalorder %s18, 0
      %p60 = por %p58, %p59
      %p61 = scmp.ne.s32.totalorder %s49, %s50
      %p62 = scmp.eq.s32.totalorder %s19, 1
      %p63 = por %p61, %p62
      %p65 = scmp.ne.s32.totalorder %s50, %s64
      %p66 = scmp.eq.s32.totalorder %s19, 0
      %p67 = por %p65, %p66
      %s69 = sadd.s32 %s68, 1
      %p72 = scmp.eq.s32.totalorder %s13, 1
      %p73 = scmp.ne.s32.totalorder %s68, %s70
      %p74 = scmp.eq.s32.totalorder %s13, 0
      %p75 = por %p73, %p74
      %p76 = scmp.ne.s32.totalorder %s68, %s70
      %p77 = scmp.eq.s32.totalorder %s18, 1
      %p78 = por %p76, %p77
      %p79 = scmp.ne.s32.totalorder %s70, %s71
      %p80 = scmp.eq.s32.totalorder %s18, 0
      %p81 = por %p79, %p80
      %p82 = scmp.ne.s32.totalorder %s70, %s71
      %p83 = scmp.eq.s32.totalorder %s19, 1
      %p84 = por %p82, %p83
      %p86 = scmp.ne.s32.totalorder %s71, %s85
      %p87 = scmp.eq.s32.totalorder %s19, 0
      %p88 = por %p86, %p87
      %s89 = ssub.s32 %s13, %s20
      %p90 = scmp.eq.s32.totalorder %s89, 0
      %s92 = sadd.s32 %s91, 1
      %s93 = scalar_select %p90, %s91, %s92
      %p96 = pneg %p90
      %p97 = scmp.eq.s32.totalorder %s13, 1
      %p98 = por %p96, %p97
      %p99 = scmp.ne.s32.totalorder %s91, %s94
      %p100 = scmp.eq.s32.totalorder %s13, 0
      %p101 = por %p99, %p100
      %p102 = scmp.ne.s32.totalorder %s91, %s94
      %p103 = scmp.eq.s32.totalorder %s18, 1
      %p104 = por %p102, %p103
      %p105 = scmp.ne.s32.totalorder %s94, %s95
      %p106 = scmp.eq.s32.totalorder %s18, 0
      %p107 = por %p105, %p106
      %p108 = scmp.ne.s32.totalorder %s94, %s95
      %p109 = scmp.eq.s32.totalorder %s19, 1
      %p110 = por %p108, %p109
      %p112 = scmp.ne.s32.totalorder %s95, %s111
      %p113 = scmp.eq.s32.totalorder %s19, 0
      %p114 = por %p112, %p113
      %p115 = scmp.le.s32.totalorder 1, %s13
      %p116 = scmp.lt.s32.totalorder %s13, 3
      %p117 = pnand %p115, %p116
      %p118 = pneg %p117
      // Predicated region
      $region9: #{my_module_forward.1} parent=5 // pred_check
        _
      $region10: #{my_module_forward.1} parent=5 // pred_check_branch
        %120 = sbr.rel (%p117) target = $region12
      $region11: #{my_module_forward.1} parent=5 // pred_region
        %s121 = ssub.s32 %s13, 1
        // Predicated region
        $region13: #{my_module_forward.1} parent=11 // pred_check
          %p122 = pneg %p60
        $region14: #{my_module_forward.1} parent=11 // pred_check_branch
          %124 = sbr.rel (%p122) target = $region16
        $region15: #{my_module_forward.1} parent=11 // pred_region
          %s126 = ssub.s32 12288, 12288
          %127 = vsyncadd [#allocation5], %s126
          %s128 = sshll.u32 [#allocation4], 4
          %s129 = int_to_ptr.vmem [resolvable:$true] %s128
          %134 = dma.hbm_to_vmem [thread:$0]  %s1, 12288, %s129, [#allocation5], 128, 128, 8
        $region16: #{my_module_forward.1} parent=11 // pred_fallthru
          _
        // Predicated region
        $region17: #{my_module_forward.1} parent=11 // pred_check
          %p135 = pneg %p81
        $region18: #{my_module_forward.1} parent=11 // pred_check_branch
          %137 = sbr.rel (%p135) target = $region20
        $region19: #{my_module_forward.1} parent=11 // pred_region
          _
        $region20: #{my_module_forward.1} parent=11 // pred_fallthru
          _
      $region12: #{my_module_forward.1} parent=5 // pred_fallthru
        _
      %p138 = scmp.lt.s32.totalorder %s13, 2
      // Predicated region
      $region21: #{my_module_forward.1} parent=5 // pred_check
        %p139 = pneg %p138
      $region22: #{my_module_forward.1} parent=5 // pred_check_branch
        %141 = sbr.rel (%p139) target = $region24
      $region23: #{my_module_forward.1} parent=5 // pred_region
        // Predicated region
        $region25: #{my_module_forward.1} parent=23 // pred_check
          %p142 = pneg %p33
        $region26: #{my_module_forward.1} parent=23 // pred_check_branch
          %144 = sbr.rel (%p142) target = $region28
        $region27: #{my_module_forward.1} parent=23 // pred_region
          %s145 = sand.u32 %s23, 1
          %s146 = scalar_lea.sflag [#allocation3], %s145
          %s147 = sand.u32 %s23, 1
          %s148 = smul.addr %s147, 192
          %s149 = scalar_lea.vmem [#allocation2], %s148
          %s150 = smul.u32 4, %s13
          %s152 = ssub.s32 3072, 3072
          %153 = vsyncadd %s146, %s152
          %s154 = smul.addr %s150, 6
          %s155 = smul.addr %s154, 128
          %s156 = scalar_lea.hbm %s0, %s155
          %s157 = sshll.u32 %s149, 4
          %s158 = int_to_ptr.vmem [resolvable:$true] %s157
          %163 = dma.hbm_to_vmem [thread:$0]  %s156, 3072, %s158, %s146, 768, 768, 48
        $region28: #{my_module_forward.1} parent=23 // pred_fallthru
          _
      $region24: #{my_module_forward.1} parent=5 // pred_fallthru
        _
      %p164 = scmp.le.s32.totalorder 1, %s13
      %p165 = scmp.lt.s32.totalorder %s13, 3
      %p166 = pnand %p164, %p165
      %p167 = pneg %p166
      // Predicated region
      $region29: #{my_module_forward.1} parent=5 // pred_check
        _
      $region30: #{my_module_forward.1} parent=5 // pred_check_branch
        %169 = sbr.rel (%p166) target = $region32
      $region31: #{my_module_forward.1} parent=5 // pred_region
        %s170 = ssub.s32 %s13, 1
        %s171 = sand.u32 %s26, 1
        %s172 = scalar_lea.sflag [#allocation3], %s171
        %s173 = sand.u32 %s26, 1
        %s174 = smul.addr %s173, 192
        %s175 = scalar_lea.vmem [#allocation2], %s174
        // Predicated region
        $region33: #{my_module_forward.1} parent=31 // pred_check
          %p176 = pneg %p39
        $region34: #{my_module_forward.1} parent=31 // pred_check_branch
          %178 = sbr.rel (%p176) target = $region36
        $region35: #{my_module_forward.1} parent=31 // pred_region
          %179 = dma.done %s172, 3072
        $region36: #{my_module_forward.1} parent=31 // pred_fallthru
          _
        // Predicated region
        $region37: #{my_module_forward.1} parent=31 // pred_check
          %p180 = pneg %p60
        $region38: #{my_module_forward.1} parent=31 // pred_check_branch
          %182 = sbr.rel (%p180) target = $region40
        $region39: #{my_module_forward.1} parent=31 // pred_region
          %183 = dma.done [#allocation5], 12288
        $region40: #{my_module_forward.1} parent=31 // pred_fallthru
          _
        %s184 = sand.u32 %s26, 1
        %s185 = scalar_lea.sflag [#allocation3], %s184
        %s186 = sand.u32 %s26, 1
        %s187 = smul.addr %s186, 192
        %s188 = scalar_lea.vmem [#allocation2], %s187
        %p189 = pneg %p39
        %p190 = pneg %p36
        %p191 = pneg %p60
        %p192 = pneg %p57
        %p193 = pneg %p81
        %p194 = pneg %p78
        %p195 = pneg %p107
        %p196 = pneg %p104
        %s197 = smul.u32 4, %s18
        %p198 = scmp.lt.s32.totalorder %s197, 7
        %s199 = scalar_select %p198, %s197, 7
        %s200 = smul.addr %s199, 8
        %s201 = scalar_lea.vmem %s3, %s200
        %s202 = smul.u32 4, %s18
        %s203 = smul.u32 4, %s18
        %p204 = scmp.lt.s32.totalorder %s203, 7
        %s205 = scalar_select %p204, %s203, 7
        %s206 = smul.addr %s205, 8
        %s207 = scalar_lea.vmem %s3, %s206
        %s208 = smul.u32 4, %s18
        %v209 = vld [vmem:[%s175] sm:$0xff]
        %v210 = vld [vmem:[%s175 + $0x8] sm:$0xff]
        %v211 = vld [vmem:[%s175 + $0x10] sm:$0xff]
        %v212 = vld [vmem:[%s175 + $0x18] sm:$0xff]
        %v213 = vld [vmem:[%s175 + $0x20] sm:$0xff]
        %v214 = vld [vmem:[%s175 + $0x28] sm:$0xff]
        %v215 = vld [vmem:[%s175 + $0x30] sm:$0xff]
        %v216 = vld [vmem:[%s175 + $0x38] sm:$0xff]
        %v217 = vld [vmem:[%s175 + $0x40] sm:$0xff]
        %v218 = vld [vmem:[%s175 + $0x48] sm:$0xff]
        %v219 = vld [vmem:[%s175 + $0x50] sm:$0xff]
        %v220 = vld [vmem:[%s175 + $0x58] sm:$0xff]
        %v221 = vld [vmem:[%s175 + $0x60] sm:$0xff]
        %v222 = vld [vmem:[%s175 + $0x68] sm:$0xff]
        %v223 = vld [vmem:[%s175 + $0x70] sm:$0xff]
        %v224 = vld [vmem:[%s175 + $0x78] sm:$0xff]
        %v225 = vld [vmem:[%s175 + $0x80] sm:$0xff]
        %v226 = vld [vmem:[%s175 + $0x88] sm:$0xff]
        %v227 = vld [vmem:[%s175 + $0x90] sm:$0xff]
        %v228 = vld [vmem:[%s175 + $0x98] sm:$0xff]
        %v229 = vld [vmem:[%s175 + $0xa0] sm:$0xff]
        %v230 = vld [vmem:[%s175 + $0xa8] sm:$0xff]
        %v231 = vld [vmem:[%s175 + $0xb0] sm:$0xff]
        %v232 = vld [vmem:[%s175 + $0xb8] sm:$0xff]
        %v233 = vld [vmem:[#allocation4] sm:$0xff]
        %v234 = vld [vmem:[#allocation4 + $0x8] sm:$0xff]
        %v235 = vld [vmem:[#allocation4 + $0x10] sm:$0xff]
        %v236 = vld [vmem:[#allocation4 + $0x18] sm:$0xff]
        %v237 = vld [vmem:[#allocation4 + $0x20] sm:$0xff]
        %v238 = vld [vmem:[#allocation4 + $0x28] sm:$0xff]
        %v239 = vld [vmem:[#allocation4 + $0x30] sm:$0xff]
        %v240 = vld [vmem:[#allocation4 + $0x38] sm:$0xff]
        %v241 = vld [vmem:[#allocation4 + $0x40] sm:$0xff]
        %v242 = vld [vmem:[#allocation4 + $0x48] sm:$0xff]
        %v243 = vld [vmem:[#allocation4 + $0x50] sm:$0xff]
        %v244 = vld [vmem:[#allocation4 + $0x58] sm:$0xff]
        %v245 = vld [vmem:[#allocation4 + $0x60] sm:$0xff]
        %v246 = vld [vmem:[#allocation4 + $0x68] sm:$0xff]
        %v247 = vld [vmem:[#allocation4 + $0x70] sm:$0xff]
        %v248 = vld [vmem:[#allocation4 + $0x78] sm:$0xff]
        %v249 = vld [vmem:[#allocation4 + $0x80] sm:$0xff]
        %v250 = vld [vmem:[#allocation4 + $0x88] sm:$0xff]
        %v251 = vld [vmem:[#allocation4 + $0x90] sm:$0xff]
        %v252 = vld [vmem:[#allocation4 + $0x98] sm:$0xff]
        %v253 = vld [vmem:[#allocation4 + $0xa0] sm:$0xff]
        %v254 = vld [vmem:[#allocation4 + $0xa8] sm:$0xff]
        %v255 = vld [vmem:[#allocation4 + $0xb0] sm:$0xff]
        %v256 = vld [vmem:[#allocation4 + $0xb8] sm:$0xff]
        %v257 = vld [vmem:[#allocation4 + $0xc0] sm:$0xff]
        %v258 = vld [vmem:[#allocation4 + $0xc8] sm:$0xff]
        %v259 = vld [vmem:[#allocation4 + $0xd0] sm:$0xff]
        %v260 = vld [vmem:[#allocation4 + $0xd8] sm:$0xff]
        %v261 = vld [vmem:[#allocation4 + $0xe0] sm:$0xff]
        %v262 = vld [vmem:[#allocation4 + $0xe8] sm:$0xff]
        %v263 = vld [vmem:[#allocation4 + $0xf0] sm:$0xff]
        %v264 = vld [vmem:[#allocation4 + $0xf8] sm:$0xff]
        %v265 = vld [vmem:[#allocation4 + $0x100] sm:$0xff]
        %v266 = vld [vmem:[#allocation4 + $0x108] sm:$0xff]
        %v267 = vld [vmem:[#allocation4 + $0x110] sm:$0xff]
        %v268 = vld [vmem:[#allocation4 + $0x118] sm:$0xff]
        %v269 = vld [vmem:[#allocation4 + $0x120] sm:$0xff]
        %v270 = vld [vmem:[#allocation4 + $0x128] sm:$0xff]
        %v271 = vld [vmem:[#allocation4 + $0x130] sm:$0xff]
        %v272 = vld [vmem:[#allocation4 + $0x138] sm:$0xff]
        %v273 = vld [vmem:[#allocation4 + $0x140] sm:$0xff]
        %v274 = vld [vmem:[#allocation4 + $0x148] sm:$0xff]
        %v275 = vld [vmem:[#allocation4 + $0x150] sm:$0xff]
        %v276 = vld [vmem:[#allocation4 + $0x158] sm:$0xff]
        %v277 = vld [vmem:[#allocation4 + $0x160] sm:$0xff]
        %v278 = vld [vmem:[#allocation4 + $0x168] sm:$0xff]
        %v279 = vld [vmem:[#allocation4 + $0x170] sm:$0xff]
        %v280 = vld [vmem:[#allocation4 + $0x178] sm:$0xff]
        %v281 = vld [vmem:[#allocation4 + $0x180] sm:$0xff]
        %v282 = vld [vmem:[#allocation4 + $0x188] sm:$0xff]
        %v283 = vld [vmem:[#allocation4 + $0x190] sm:$0xff]
        %v284 = vld [vmem:[#allocation4 + $0x198] sm:$0xff]
        %v285 = vld [vmem:[#allocation4 + $0x1a0] sm:$0xff]
        %v286 = vld [vmem:[#allocation4 + $0x1a8] sm:$0xff]
        %v287 = vld [vmem:[#allocation4 + $0x1b0] sm:$0xff]
        %v288 = vld [vmem:[#allocation4 + $0x1b8] sm:$0xff]
        %v289 = vld [vmem:[#allocation4 + $0x1c0] sm:$0xff]
        %v290 = vld [vmem:[#allocation4 + $0x1c8] sm:$0xff]
        %v291 = vld [vmem:[#allocation4 + $0x1d0] sm:$0xff]
        %v292 = vld [vmem:[#allocation4 + $0x1d8] sm:$0xff]
        %v293 = vld [vmem:[#allocation4 + $0x1e0] sm:$0xff]
        %v294 = vld [vmem:[#allocation4 + $0x1e8] sm:$0xff]
        %v295 = vld [vmem:[#allocation4 + $0x1f0] sm:$0xff]
        %v296 = vld [vmem:[#allocation4 + $0x1f8] sm:$0xff]
        %v297 = vld [vmem:[#allocation4 + $0x200] sm:$0xff]
        %v298 = vld [vmem:[#allocation4 + $0x208] sm:$0xff]
        %v299 = vld [vmem:[#allocation4 + $0x210] sm:$0xff]
        %v300 = vld [vmem:[#allocation4 + $0x218] sm:$0xff]
        %v301 = vld [vmem:[#allocation4 + $0x220] sm:$0xff]
        %v302 = vld [vmem:[#allocation4 + $0x228] sm:$0xff]
        %v303 = vld [vmem:[#allocation4 + $0x230] sm:$0xff]
        %v304 = vld [vmem:[#allocation4 + $0x238] sm:$0xff]
        %v305 = vld [vmem:[#allocation4 + $0x240] sm:$0xff]
        %v306 = vld [vmem:[#allocation4 + $0x248] sm:$0xff]
        %v307 = vld [vmem:[#allocation4 + $0x250] sm:$0xff]
        %v308 = vld [vmem:[#allocation4 + $0x258] sm:$0xff]
        %v309 = vld [vmem:[#allocation4 + $0x260] sm:$0xff]
        %v310 = vld [vmem:[#allocation4 + $0x268] sm:$0xff]
        %v311 = vld [vmem:[#allocation4 + $0x270] sm:$0xff]
        %v312 = vld [vmem:[#allocation4 + $0x278] sm:$0xff]
        %v313 = vld [vmem:[#allocation4 + $0x280] sm:$0xff]
        %v314 = vld [vmem:[#allocation4 + $0x288] sm:$0xff]
        %v315 = vld [vmem:[#allocation4 + $0x290] sm:$0xff]
        %v316 = vld [vmem:[#allocation4 + $0x298] sm:$0xff]
        %v317 = vld [vmem:[#allocation4 + $0x2a0] sm:$0xff]
        %v318 = vld [vmem:[#allocation4 + $0x2a8] sm:$0xff]
        %v319 = vld [vmem:[#allocation4 + $0x2b0] sm:$0xff]
        %v320 = vld [vmem:[#allocation4 + $0x2b8] sm:$0xff]
        %v321 = vld [vmem:[#allocation4 + $0x2c0] sm:$0xff]
        %v322 = vld [vmem:[#allocation4 + $0x2c8] sm:$0xff]
        %v323 = vld [vmem:[#allocation4 + $0x2d0] sm:$0xff]
        %v324 = vld [vmem:[#allocation4 + $0x2d8] sm:$0xff]
        %v325 = vld [vmem:[#allocation4 + $0x2e0] sm:$0xff]
        %v326 = vld [vmem:[#allocation4 + $0x2e8] sm:$0xff]
        %v327 = vld [vmem:[#allocation4 + $0x2f0] sm:$0xff]
        %v328 = vld [vmem:[#allocation4 + $0x2f8] sm:$0xff]
        %v329 = vld [vmem:[%s2] sm:$0x1]
        %v331 = vlaneseq
        %v332 = vshrl.u32 %v331, 7
        %v333 = vsub.s32 0, %v332
        %v334 = vrot.slane %v329, %v333
        %336 = vmatprep.subr.mxu0 0.0
        %337 = vmatpush1.msra.mxu0 %v248
        %338 = vmatprep.subr.mxu0 0.0
        %339 = vmatpush1.msra.mxu0 %v247
        %340 = vmatprep.subr.mxu0 0.0
        %341 = vmatpush1.msra.mxu0 %v246
        %342 = vmatprep.subr.mxu0 0.0
        %343 = vmatpush1.msra.mxu0 %v245
        %344 = vmatprep.subr.mxu0 0.0
        %345 = vmatpush1.msra.mxu0 %v244
        %346 = vmatprep.subr.mxu0 0.0
        %347 = vmatpush1.msra.mxu0 %v243
        %348 = vmatprep.subr.mxu0 0.0
        %349 = vmatpush1.msra.mxu0 %v242
        %350 = vmatprep.subr.mxu0 0.0
        %351 = vmatpush1.msra.mxu0 %v241
        %352 = vmatprep.subr.mxu0 0.0
        %353 = vmatpush1.msra.mxu0 %v240
        %354 = vmatprep.subr.mxu0 0.0
        %355 = vmatpush1.msra.mxu0 %v239
        %356 = vmatprep.subr.mxu0 0.0
        %357 = vmatpush1.msra.mxu0 %v238
        %358 = vmatprep.subr.mxu0 0.0
        %359 = vmatpush1.msra.mxu0 %v237
        %360 = vmatprep.subr.mxu0 0.0
        %361 = vmatpush1.msra.mxu0 %v236
        %362 = vmatprep.subr.mxu0 0.0
        %363 = vmatpush1.msra.mxu0 %v235
        %364 = vmatprep.subr.mxu0 0.0
        %365 = vmatpush1.msra.mxu0 %v234
        %366 = vmatprep.subr.mxu0 0.0
        %367 = vmatpush1.msra.mxu0 %v233
        %368 = vmatprep.subr.mxu0 0.0
        %369 = vmatpush2.msra.mxu0 %v264
        %370 = vmatprep.subr.mxu0 0.0
        %371 = vmatpush2.msra.mxu0 %v263
        %372 = vmatprep.subr.mxu0 0.0
        %373 = vmatpush2.msra.mxu0 %v262
        %374 = vmatprep.subr.mxu0 0.0
        %375 = vmatpush2.msra.mxu0 %v261
        %376 = vmatprep.subr.mxu0 0.0
        %377 = vmatpush2.msra.mxu0 %v260
        %378 = vmatprep.subr.mxu0 0.0
        %379 = vmatpush2.msra.mxu0 %v259
        %380 = vmatprep.subr.mxu0 0.0
        %381 = vmatpush2.msra.mxu0 %v258
        %382 = vmatprep.subr.mxu0 0.0
        %383 = vmatpush2.msra.mxu0 %v257
        %384 = vmatprep.subr.mxu0 0.0
        %385 = vmatpush2.msra.mxu0 %v256
        %386 = vmatprep.subr.mxu0 0.0
        %387 = vmatpush2.msra.mxu0 %v255
        %388 = vmatprep.subr.mxu0 0.0
        %389 = vmatpush2.msra.mxu0 %v254
        %390 = vmatprep.subr.mxu0 0.0
        %391 = vmatpush2.msra.mxu0 %v253
        %392 = vmatprep.subr.mxu0 0.0
        %393 = vmatpush2.msra.mxu0 %v252
        %394 = vmatprep.subr.mxu0 0.0
        %395 = vmatpush2.msra.mxu0 %v251
        %396 = vmatprep.subr.mxu0 0.0
        %397 = vmatpush2.msra.mxu0 %v250
        %398 = vmatprep.subr.mxu0 0.0
        %399 = vmatpush2.msra.mxu0 %v249
        %400 = vmatprep.mubr.f32.mxu0 %v210
        %401 = vmatmul.mubr.f32.gmra.mxu0 %v209
        %v402 = vpop.f32.mrf.mxu0
        %v403 = vadd.f32 %v334, %v402
        %v404 = vpop.f32.mrf.mxu0
        %405 = vmatprep.mubr.f32.mxu0 %v216
        %406 = vmatmul.mubr.f32.gmra.mxu0 %v215
        %v407 = vpop.f32.mrf.mxu0
        %v408 = vadd.f32 %v334, %v407
        %v409 = vpop.f32.mrf.mxu0
        %410 = vmatprep.mubr.f32.mxu0 %v222
        %411 = vmatmul.mubr.f32.gmra.mxu0 %v221
        %v412 = vpop.f32.mrf.mxu0
        %v413 = vadd.f32 %v334, %v412
        %v414 = vpop.f32.mrf.mxu0
        %415 = vmatprep.mubr.f32.mxu0 %v228
        %416 = vmatmul.mubr.f32.gmra.mxu0 %v227
        %v417 = vpop.f32.mrf.mxu0
        %v418 = vadd.f32 %v334, %v417
        %v419 = vpop.f32.mrf.mxu0
        %420 = vdwg.mxu0
        %421 = vmatprep.subr.mxu0 0.0
        %422 = vmatpush1.msra.mxu0 %v280
        %423 = vmatprep.subr.mxu0 0.0
        %424 = vmatpush1.msra.mxu0 %v279
        %425 = vmatprep.subr.mxu0 0.0
        %426 = vmatpush1.msra.mxu0 %v278
        %427 = vmatprep.subr.mxu0 0.0
        %428 = vmatpush1.msra.mxu0 %v277
        %429 = vmatprep.subr.mxu0 0.0
        %430 = vmatpush1.msra.mxu0 %v276
        %431 = vmatprep.subr.mxu0 0.0
        %432 = vmatpush1.msra.mxu0 %v275
        %433 = vmatprep.subr.mxu0 0.0
        %434 = vmatpush1.msra.mxu0 %v274
        %435 = vmatprep.subr.mxu0 0.0
        %436 = vmatpush1.msra.mxu0 %v273
        %437 = vmatprep.subr.mxu0 0.0
        %438 = vmatpush1.msra.mxu0 %v272
        %439 = vmatprep.subr.mxu0 0.0
        %440 = vmatpush1.msra.mxu0 %v271
        %441 = vmatprep.subr.mxu0 0.0
        %442 = vmatpush1.msra.mxu0 %v270
        %443 = vmatprep.subr.mxu0 0.0
        %444 = vmatpush1.msra.mxu0 %v269
        %445 = vmatprep.subr.mxu0 0.0
        %446 = vmatpush1.msra.mxu0 %v268
        %447 = vmatprep.subr.mxu0 0.0
        %448 = vmatpush1.msra.mxu0 %v267
        %449 = vmatprep.subr.mxu0 0.0
        %450 = vmatpush1.msra.mxu0 %v266
        %451 = vmatprep.subr.mxu0 0.0
        %452 = vmatpush1.msra.mxu0 %v265
        %453 = vmatprep.subr.mxu0 0.0
        %454 = vmatpush2.msra.mxu0 %v296
        %455 = vmatprep.subr.mxu0 0.0
        %456 = vmatpush2.msra.mxu0 %v295
        %457 = vmatprep.subr.mxu0 0.0
        %458 = vmatpush2.msra.mxu0 %v294
        %459 = vmatprep.subr.mxu0 0.0
        %460 = vmatpush2.msra.mxu0 %v293
        %461 = vmatprep.subr.mxu0 0.0
        %462 = vmatpush2.msra.mxu0 %v292
        %463 = vmatprep.subr.mxu0 0.0
        %464 = vmatpush2.msra.mxu0 %v291
        %465 = vmatprep.subr.mxu0 0.0
        %466 = vmatpush2.msra.mxu0 %v290
        %467 = vmatprep.subr.mxu0 0.0
        %468 = vmatpush2.msra.mxu0 %v289
        %469 = vmatprep.subr.mxu0 0.0
        %470 = vmatpush2.msra.mxu0 %v288
        %471 = vmatprep.subr.mxu0 0.0
        %472 = vmatpush2.msra.mxu0 %v287
        %473 = vmatprep.subr.mxu0 0.0
        %474 = vmatpush2.msra.mxu0 %v286
        %475 = vmatprep.subr.mxu0 0.0
        %476 = vmatpush2.msra.mxu0 %v285
        %477 = vmatprep.subr.mxu0 0.0
        %478 = vmatpush2.msra.mxu0 %v284
        %479 = vmatprep.subr.mxu0 0.0
        %480 = vmatpush2.msra.mxu0 %v283
        %481 = vmatprep.subr.mxu0 0.0
        %482 = vmatpush2.msra.mxu0 %v282
        %483 = vmatprep.subr.mxu0 0.0
        %484 = vmatpush2.msra.mxu0 %v281
        %485 = vmatprep.mubr.f32.mxu0 %v212
        %486 = vmatmul.mubr.f32.gmra.mxu0 %v211
        %v487 = vpop.f32.mrf.mxu0
        %v488 = vadd.f32 %v403, %v487
        %v489 = vpop.f32.mrf.mxu0
        %490 = vmatprep.mubr.f32.mxu0 %v218
        %491 = vmatmul.mubr.f32.gmra.mxu0 %v217
        %v492 = vpop.f32.mrf.mxu0
        %v493 = vadd.f32 %v408, %v492
        %v494 = vpop.f32.mrf.mxu0
        %495 = vmatprep.mubr.f32.mxu0 %v224
        %496 = vmatmul.mubr.f32.gmra.mxu0 %v223
        %v497 = vpop.f32.mrf.mxu0
        %v498 = vadd.f32 %v413, %v497
        %v499 = vpop.f32.mrf.mxu0
        %500 = vmatprep.mubr.f32.mxu0 %v230
        %501 = vmatmul.mubr.f32.gmra.mxu0 %v229
        %v502 = vpop.f32.mrf.mxu0
        %v503 = vadd.f32 %v418, %v502
        %v504 = vpop.f32.mrf.mxu0
        %505 = vdwg.mxu0
        %506 = vmatprep.subr.mxu0 0.0
        %507 = vmatpush1.msra.mxu0 %v312
        %508 = vmatprep.subr.mxu0 0.0
        %509 = vmatpush1.msra.mxu0 %v311
        %510 = vmatprep.subr.mxu0 0.0
        %511 = vmatpush1.msra.mxu0 %v310
        %512 = vmatprep.subr.mxu0 0.0
        %513 = vmatpush1.msra.mxu0 %v309
        %514 = vmatprep.subr.mxu0 0.0
        %515 = vmatpush1.msra.mxu0 %v308
        %516 = vmatprep.subr.mxu0 0.0
        %517 = vmatpush1.msra.mxu0 %v307
        %518 = vmatprep.subr.mxu0 0.0
        %519 = vmatpush1.msra.mxu0 %v306
        %520 = vmatprep.subr.mxu0 0.0
        %521 = vmatpush1.msra.mxu0 %v305
        %522 = vmatprep.subr.mxu0 0.0
        %523 = vmatpush1.msra.mxu0 %v304
        %524 = vmatprep.subr.mxu0 0.0
        %525 = vmatpush1.msra.mxu0 %v303
        %526 = vmatprep.subr.mxu0 0.0
        %527 = vmatpush1.msra.mxu0 %v302
        %528 = vmatprep.subr.mxu0 0.0
        %529 = vmatpush1.msra.mxu0 %v301
        %530 = vmatprep.subr.mxu0 0.0
        %531 = vmatpush1.msra.mxu0 %v300
        %532 = vmatprep.subr.mxu0 0.0
        %533 = vmatpush1.msra.mxu0 %v299
        %534 = vmatprep.subr.mxu0 0.0
        %535 = vmatpush1.msra.mxu0 %v298
        %536 = vmatprep.subr.mxu0 0.0
        %537 = vmatpush1.msra.mxu0 %v297
        %538 = vmatprep.subr.mxu0 0.0
        %539 = vmatpush2.msra.mxu0 %v328
        %540 = vmatprep.subr.mxu0 0.0
        %541 = vmatpush2.msra.mxu0 %v327
        %542 = vmatprep.subr.mxu0 0.0
        %543 = vmatpush2.msra.mxu0 %v326
        %544 = vmatprep.subr.mxu0 0.0
        %545 = vmatpush2.msra.mxu0 %v325
        %546 = vmatprep.subr.mxu0 0.0
        %547 = vmatpush2.msra.mxu0 %v324
        %548 = vmatprep.subr.mxu0 0.0
        %549 = vmatpush2.msra.mxu0 %v323
        %550 = vmatprep.subr.mxu0 0.0
        %551 = vmatpush2.msra.mxu0 %v322
        %552 = vmatprep.subr.mxu0 0.0
        %553 = vmatpush2.msra.mxu0 %v321
        %554 = vmatprep.subr.mxu0 0.0
        %555 = vmatpush2.msra.mxu0 %v320
        %556 = vmatprep.subr.mxu0 0.0
        %557 = vmatpush2.msra.mxu0 %v319
        %558 = vmatprep.subr.mxu0 0.0
        %559 = vmatpush2.msra.mxu0 %v318
        %560 = vmatprep.subr.mxu0 0.0
        %561 = vmatpush2.msra.mxu0 %v317
        %562 = vmatprep.subr.mxu0 0.0
        %563 = vmatpush2.msra.mxu0 %v316
        %564 = vmatprep.subr.mxu0 0.0
        %565 = vmatpush2.msra.mxu0 %v315
        %566 = vmatprep.subr.mxu0 0.0
        %567 = vmatpush2.msra.mxu0 %v314
        %568 = vmatprep.subr.mxu0 0.0
        %569 = vmatpush2.msra.mxu0 %v313
        %570 = vmatprep.mubr.f32.mxu0 %v214
        %571 = vmatmul.mubr.f32.gmra.mxu0 %v213
        %v572 = vpop.f32.mrf.mxu0
        %v573 = vadd.f32 %v488, %v572
        %v574 = vpop.f32.mrf.mxu0
        %575 = vmatprep.mubr.f32.mxu0 %v220
        %576 = vmatmul.mubr.f32.gmra.mxu0 %v219
        %v577 = vpop.f32.mrf.mxu0
        %v578 = vadd.f32 %v493, %v577
        %v579 = vpop.f32.mrf.mxu0
        %580 = vmatprep.mubr.f32.mxu0 %v226
        %581 = vmatmul.mubr.f32.gmra.mxu0 %v225
        %v582 = vpop.f32.mrf.mxu0
        %v583 = vadd.f32 %v498, %v582
        %v584 = vpop.f32.mrf.mxu0
        %585 = vmatprep.mubr.f32.mxu0 %v232
        %586 = vmatmul.mubr.f32.gmra.mxu0 %v231
        %v587 = vpop.f32.mrf.mxu0
        %v588 = vadd.f32 %v503, %v587
        %v589 = vpop.f32.mrf.mxu0
        %590 = vdwg.mxu0
        %591 = vst [vmem:[%s207] sm:$0xff] %v573
        %592 = vst [vmem:[%s207 + $0x8] sm:$0xff] %v578
        %593 = vst [vmem:[%s207 + $0x10] sm:$0xff] %v583
        %594 = vst [vmem:[%s207 + $0x18] sm:$0xff] %v588
        %s595 = smul.u32 4, %s18
        %p596 = scmp.lt.s32.totalorder %s595, 7
        %s597 = scalar_select %p596, %s595, 7
        %s598 = smul.addr %s597, 8
        %s599 = scalar_lea.vmem %s3, %s598
        // Predicated region
        $region41: #{my_module_forward.1} parent=31 // pred_check
          %p600 = pneg %p104
        $region42: #{my_module_forward.1} parent=31 // pred_check_branch
          %602 = sbr.rel (%p600) target = $region44
        $region43: #{my_module_forward.1} parent=31 // pred_region
          %s603 = smul.u32 4, %s18
        $region44: #{my_module_forward.1} parent=31 // pred_fallthru
          _
      $region32: #{my_module_forward.1} parent=5 // pred_fallthru
        _
      %p604 = scmp.le.s32.totalorder 2, %s13
      // Predicated region
      $region45: #{my_module_forward.1} parent=5 // pred_check
        %p605 = pneg %p604
      $region46: #{my_module_forward.1} parent=5 // pred_check_branch
        %607 = sbr.rel (%p605) target = $region48
      $region47: #{my_module_forward.1} parent=5 // pred_region
        %s608 = ssub.s32 %s13, 2
        // Predicated region
        $region49: #{my_module_forward.1} parent=47 // pred_check
          %p609 = pneg %p110
        $region50: #{my_module_forward.1} parent=47 // pred_check_branch
          %611 = sbr.rel (%p609) target = $region52
        $region51: #{my_module_forward.1} parent=47 // pred_region
          %s612 = smul.u32 4, %s19
          %p613 = scmp.lt.s32.totalorder %s612, 7
          %s614 = scalar_select %p613, %s612, 7
          %s615 = smul.addr %s614, 8
          %s616 = scalar_lea.vmem %s3, %s615
        $region52: #{my_module_forward.1} parent=47 // pred_fallthru
          _
      $region48: #{my_module_forward.1} parent=5 // pred_fallthru
        _
    $region6: #{my_module_forward.1} parent=1 // loop_footer
      %s17 = sadd.s32 1, %s13
    $region7: #{my_module_forward.1} parent=1 // loop_footer_branch
      %12 = sbr.rel target = $region3
    $region8: #{my_module_forward.1} parent=1 // loop_exit
      _
    %617 = vsyncpa [#allocation3], 1
    %s618 = scalar_lea.sflag [#allocation3], 1
    %619 = vsyncpa %s618, 1
    %620 = vsyncpa [#allocation5], 1

</llo_original>
